<compile_context>
chip_gen: v6e
topology: v6e:2x2x1
jax: 0.10.0
libtpu: 0.0.40
codegen_flags: <defaults>
</compile_context>

<pallas_src>
import functools

import jax
import jax.numpy as jnp
import numpy as np
from jax.experimental import pallas as pl
from jax.experimental.pallas import tpu as pltpu


def _cdiv(a, b):
    return -(-a // b)


def _vmem_capacity_bytes():
    """Per-TensorCore VMEM capacity; conservative fallback if query fails."""
    try:
        return int(pltpu.get_tpu_info().vmem_capacity_bytes)
    except Exception:
        return 64 << 20  # v7x per-core VMEM (smallest current generation)


def _concat_kernel(*refs, offsets, widths, lane_concat):
    """Copy each input block into its static slab of the output block.

    Q > 1 (lane_concat=False):
      x_ref_k : (TP, C_k,     TQ) VMEM   o_ref : (TP, c_total, TQ) VMEM
      slab along the channel (sublane-ish) axis.
    Q == 1 (lane_concat=True):
      x_ref_k : (TP, 1, C_k)      VMEM   o_ref : (TP, 1, c_total) VMEM
      slab along the lane axis.
    Dtype promotion (if any) rides the VPU for free under the DMA bound.
    """
    *in_refs, o_ref = refs
    for x_ref, c0, ck in zip(in_refs, offsets, widths):
        blk = x_ref[...].astype(o_ref.dtype)
        if lane_concat:
            o_ref[:, :, c0:c0 + ck] = blk
        else:
            o_ref[:, c0:c0 + ck, :] = blk


def _pick_tiles(P, Q, row_bytes, budget_bytes):
    """Pick (TP, TQ) for the (P, *, Q) views.

    row_bytes = bytes moved per (p, q) element across all inputs + the output.
    Returned blocks keep the double-buffered per-step working set under
    `budget_bytes`.
    """

    def blk_bytes(tp, tq):
        return 2 * tp * tq * row_bytes  # x2: BlockSpec double-buffering

    # 1) Lane tile: keep full rows (one contiguous HBM region per input) unless
    #    even a single row exceeds the budget; then fall back to 128-multiples
    #    (grid uses cdiv + edge masking, no divisibility requirement).
    if Q <= 128 or blk_bytes(1, Q) <= budget_bytes:
        tq = Q
    else:
        tq = max(128, (budget_bytes // (2 * row_bytes)) // 128 * 128)

    # 2) Batch tile: grow TP until the working set is ~budget (1-16+ MiB blocks
    #    sit on the measured HBM-roofline plateau).
    tp = max(1, min(P, budget_bytes // max(1, blk_bytes(1, tq))))

    # 3) Step-count shaping: enough steps for pipelining and for v7x's two
    #    TensorCores on big problems; minimal steps for tiny problems.
    total_bytes = P * Q * row_bytes
    if total_bytes >= (8 << 20):
        min_steps = 8
    elif total_bytes >= (512 << 10):
        min_steps = 2
    else:
        min_steps = 1

    nq = _cdiv(Q, tq)
    if _cdiv(P, tp) * nq < min_steps:
        want_p = min(P, _cdiv(min_steps, nq))
        tp = _cdiv(P, want_p)  # never grows tp -> still within budget

    if _cdiv(P, tp) * _cdiv(Q, tq) < min_steps and tq == Q and Q >= 512:
        # Large single-row problems: split Q so both cores / the pipeline
        # have work, keeping tiles as 128-multiples.
        want_q = min(Q // 128, _cdiv(min_steps, _cdiv(P, tp)))
        if want_q > 1:
            new_tq = ((_cdiv(Q, want_q) + 127) // 128) * 128
            if new_tq < Q:
                tq = new_tq

    return tp, tq


def concat(xs, dimension=1):
    """JAX/Pallas equivalent of Concat(dimension).forward(xs)."""
    xs = list(xs)
    assert len(xs) >= 1
    ndim = xs[0].ndim
    d = dimension % ndim
    base = xs[0].shape
    for x in xs:
        assert x.ndim == ndim
        for ax in range(ndim):
            if ax != d:
                assert x.shape[ax] == base[ax], "non-concat dims must match"

    # JAX promotion rules; may differ from torch.cat in exotic mixed-dtype
    # corner cases. The cast itself happens *inside* the kernel (no extra XLA
    # convert pass over HBM).
    out_dtype = jnp.result_type(*[x.dtype for x in xs])

    P = int(np.prod(base[:d], dtype=np.int64))
    Q = int(np.prod(base[d + 1:], dtype=np.int64))
    widths = tuple(int(x.shape[d]) for x in xs)
    c_total = int(sum(widths))
    offsets = tuple(int(o) for o in np.cumsum((0,) + widths)[:-1])

    lane_concat = (Q == 1)  # concat along the last dim -> lane-slab path
    if lane_concat:
        xs3 = [x.reshape(P, 1, c) for x, c in zip(xs, widths)]
        out3_shape = (P, 1, c_total)
    else:
        xs3 = [x.reshape(P, c, Q) for x, c in zip(xs, widths)]
        out3_shape = (P, c_total, Q)

    out_itemsize = jnp.dtype(out_dtype).itemsize
    in_itemsizes = [jnp.dtype(x.dtype).itemsize for x in xs]
    row_bytes = sum(c * s for c, s in zip(widths, in_itemsizes)) + c_total * out_itemsize

    vmem_cap = _vmem_capacity_bytes()
    budget = max(1 << 20, vmem_cap // 4)          # ~16 MiB v7x, ~32 MiB v5e/v6e
    TP, TQ = _pick_tiles(P, Q, row_bytes, budget)  # TQ == 1 on the lane path

    if lane_concat:
        in_specs = [pl.BlockSpec((TP, 1, c), lambda p, q: (p, 0, 0)) for c in widths]
        out_spec = pl.BlockSpec((TP, 1, c_total), lambda p, q: (p, 0, 0))
    else:
        in_specs = [pl.BlockSpec((TP, c, TQ), lambda p, q: (p, 0, q)) for c in widths]
        out_spec = pl.BlockSpec((TP, c_total, TQ), lambda p, q: (p, 0, q))
    grid = (_cdiv(P, TP), _cdiv(Q, TQ))

    # VMEM request: cap at ~48 MiB on v7x (64 MiB/core) / 64 MiB on v5e/v6e,
    # always leaving headroom for compiler-internal scratch.
    step_bytes = 2 * TP * TQ * row_bytes
    vmem_limit = int(min(64 << 20, (3 * vmem_cap) // 4))
    needed = (step_bytes * 5) // 4
    if needed > vmem_limit:
        vmem_limit = int(min((9 * vmem_cap) // 10, needed))
    vmem_limit = int(max(vmem_limit, 32 << 20))

    kernel = functools.partial(_concat_kernel, offsets=offsets, widths=widths,
                               lane_concat=lane_concat)

    total_bytes = int(sum(int(x.nbytes) for x in xs)
                      + int(np.prod(out3_shape, dtype=np.int64)) * out_itemsize)

    out3 = pl.pallas_call(
        kernel,
        out_shape=jax.ShapeDtypeStruct(out3_shape, out_dtype),
        grid_spec=pltpu.PrefetchScalarGridSpec(
            num_scalar_prefetch=0,
            grid=grid,
            in_specs=in_specs,
            out_specs=out_spec,
        ),
        compiler_params=pltpu.CompilerParams(
            dimension_semantics=("parallel", "parallel"),
            vmem_limit_bytes=vmem_limit,
        ),
        cost_estimate=pl.CostEstimate(
            flops=0, transcendentals=0, bytes_accessed=total_bytes),
    )(*xs3)

    out_shape = base[:d] + (c_total,) + base[d + 1:]
    return out3.reshape(out_shape)


if __name__ == "__main__":
    key = jax.random.PRNGKey(0)
    k1, k2, k3, k4, k5, k6 = jax.random.split(key, 6)

    # 1) Canonical NCHW channel concat (dim=1), as in the PyTorch module.
    x0 = jax.random.normal(k1, (2, 4, 16, 16), dtype=jnp.float32)
    x1 = jax.random.normal(k2, (2, 4, 16, 16), dtype=jnp.float32)
    out = jax.block_until_ready(concat([x0, x1], dimension=1))
    ref = jnp.concatenate([x0, x1], axis=1)
    assert out.shape == ref.shape and out.dtype == ref.dtype
    assert jnp.array_equal(out, ref), "Pallas Concat (dim=1) mismatch"

    # 2) Sublane-misaligned channel widths (odd channel counts).
    y0 = jax.random.normal(k3, (2, 3, 16, 16), dtype=jnp.float32)
    y1 = jax.random.normal(k4, (2, 5, 16, 16), dtype=jnp.float32)
    out = jax.block_until_ready(concat([y0, y1], dimension=1))
    ref = jnp.concatenate([y0, y1], axis=1)
    assert jnp.array_equal(out, ref), "Pallas Concat (odd widths) mismatch"

    # 3) Concat along the last dim (Q == 1 guard path).
    z0 = jax.random.normal(k5, (2, 4, 8, 16), dtype=jnp.float32)
    z1 = jax.random.normal(k6, (2, 4, 8, 16), dtype=jnp.float32)
    out = jax.block_until_ready(concat([z0, z1], dimension=3))
    ref = jnp.concatenate([z0, z1], axis=3)
    assert jnp.array_equal(out, ref), "Pallas Concat (last dim) mismatch"

    print("KERNEL_OK")
</pallas_src>

<mosaic_0001>
module attributes {stable_mosaic.version = 11 : i64} {
  func.func @_concat_kernel(%arg0: i32, %arg1: i32, %arg2: memref<2x4x256xf32, #tpu.memory_space<vmem>>, %arg3: memref<2x4x256xf32, #tpu.memory_space<vmem>>, %arg4: memref<2x8x256xf32, #tpu.memory_space<vmem>>) attributes {dimension_semantics = [#tpu.dimension_semantics<parallel>, #tpu.dimension_semantics<parallel>], iteration_bounds = array<i64: 1, 1>, scalar_prefetch = 0 : i64, scratch_operands = 0 : i64, tpu.core_type = #tpu.core_type<tc>, window_params = [{transform_indices = @transform_0, window_bounds = array<i64: 2, 4, 256>}, {transform_indices = @transform_1, window_bounds = array<i64: 2, 4, 256>}, {transform_indices = @transform_2, window_bounds = array<i64: 2, 8, 256>}]} {
    %c0 = arith.constant 0 : index
    %c0_0 = arith.constant 0 : index
    %c0_1 = arith.constant 0 : index
    %0 = vector.load %arg2[%c0, %c0_0, %c0_1] : memref<2x4x256xf32, #tpu.memory_space<vmem>>, vector<2x4x256xf32>
    %c0_2 = arith.constant 0 : index
    %c0_3 = arith.constant 0 : index
    %c0_4 = arith.constant 0 : index
    %1 = vector.load %arg4[%c0_2, %c0_3, %c0_4] : memref<2x8x256xf32, #tpu.memory_space<vmem>>, vector<2x4x256xf32>
    tpu.vector_store %arg4[%c0_2, %c0_3, %c0_4], %0 {strides = array<i32>} : memref<2x8x256xf32, #tpu.memory_space<vmem>>, vector<2x4x256xf32>,
    %c0_5 = arith.constant 0 : index
    %c0_6 = arith.constant 0 : index
    %c0_7 = arith.constant 0 : index
    %2 = vector.load %arg3[%c0_5, %c0_6, %c0_7] : memref<2x4x256xf32, #tpu.memory_space<vmem>>, vector<2x4x256xf32>
    %c0_8 = arith.constant 0 : index
    %c4 = arith.constant 4 : index
    %c0_9 = arith.constant 0 : index
    %3 = vector.load %arg4[%c0_8, %c4, %c0_9] : memref<2x8x256xf32, #tpu.memory_space<vmem>>, vector<2x4x256xf32>
    tpu.vector_store %arg4[%c0_8, %c4, %c0_9], %2 {strides = array<i32>} : memref<2x8x256xf32, #tpu.memory_space<vmem>>, vector<2x4x256xf32>,
    return
  }
  func.func @transform_0(%arg0: i32, %arg1: i32) -> (i32, i32, i32) {
    %c0_i32 = arith.constant 0 : i32
    %c0_i32_0 = arith.constant 0 : i32
    return %arg0, %c0_i32, %arg1 : i32, i32, i32
  }
  func.func @transform_1(%arg0: i32, %arg1: i32) -> (i32, i32, i32) {
    %c0_i32 = arith.constant 0 : i32
    %c0_i32_0 = arith.constant 0 : i32
    return %arg0, %c0_i32, %arg1 : i32, i32, i32
  }
  func.func @transform_2(%arg0: i32, %arg1: i32) -> (i32, i32, i32) {
    %c0_i32 = arith.constant 0 : i32
    %c0_i32_0 = arith.constant 0 : i32
    return %arg0, %c0_i32, %arg1 : i32, i32, i32
  }
}

</mosaic_0001>

<llo_original>
// kernel: tpu_custom_call.1
$region0: #{tpu_custom_call.1}
  #allocation0 [shape = 'u32[]', space=smem, size = 0x4, offset = 0x4, fixed_abs, tag = 'smem constant byte address 0x4 - core index']
  #allocation1 [shape = 'u32[144,128]{1,0:T(1,128)}', space=vmem, size = 0x12000, scoped, tag = 'internal scratch']
  %s0 = inlined_call_operand.hbm [shape: f32[2,4,256], index: 0, kind: input, shape index: {}]
  %s1 = inlined_call_operand.hbm [shape: f32[2,4,256], index: 1, kind: input, shape index: {}]
  %s2 = inlined_call_operand.hbm [shape: f32[2,8,256], index: 2, kind: output, shape index: {}]
  %s3 = sld [smem:[#allocation0]]
  $region26: #{tpu_custom_call.1} parent=0
    _
  %s5 = ssub.s32 1, %s3
  %s6 = scalar_select 0, %s5, %s3
  $region1: #{tpu_custom_call.1} parent=0
    #allocation2 [shape = 'u8[8192]{0}', space=vmem, size = 0x2000, scoped, tag = 'input window, operand 0, single buffered']
    #allocation3 [shape = 's32[1]{0}', space=sflag, size = 0x4, scoped, tag = 'scoped memory for tpu_custom_call.1']
    #allocation4 [shape = 's32[1]{0}', space=sflag, size = 0x4, scoped, tag = 'scoped memory for tpu_custom_call.1']
    #allocation5 [shape = 'u8[8192]{0}', space=vmem, size = 0x2000, scoped, tag = 'input window, operand 1, single buffered']
    #allocation6 [shape = 's32[1]{0}', space=sflag, size = 0x4, scoped, tag = 'scoped memory for tpu_custom_call.1']
    #allocation7 [shape = 'u8[16384]{0}', space=vmem, size = 0x4000, scoped, tag = 'output window, operand 0, single buffered']
    %7 = vsyncpa [#allocation3], 0
    %8 = vsyncpa [#allocation6], 0
    %9 = vsyncpa [#allocation4], 0
    // Predicated region
    $region2: #{tpu_custom_call.1} parent=1 // pred_check
      _
    $region3: #{tpu_custom_call.1} parent=1 // pred_check_branch
      %11 = sbr.rel (0) target = $region5
    $region4: #{tpu_custom_call.1} parent=1 // pred_region
      %s13 = ssub.s32 256, 256
      %14 = vsyncadd [#allocation3], %s13
      %s15 = sshll.u32 [#allocation2], 4
      %s16 = int_to_ptr.vmem [resolvable:$true] %s15
      %21 = dma.hbm_to_vmem [thread:$0]  %s0, 256, %s16, [#allocation3], 128, 128, 8
    $region5: #{tpu_custom_call.1} parent=1 // pred_fallthru
      _
    // Predicated region
    $region6: #{tpu_custom_call.1} parent=1 // pred_check
      _
    $region7: #{tpu_custom_call.1} parent=1 // pred_check_branch
      %23 = sbr.rel (0) target = $region9
    $region8: #{tpu_custom_call.1} parent=1 // pred_region
      %s25 = ssub.s32 256, 256
      %26 = vsyncadd [#allocation6], %s25
      %s27 = sshll.u32 [#allocation5], 4
      %s28 = int_to_ptr.vmem [resolvable:$true] %s27
      %33 = dma.hbm_to_vmem [thread:$0]  %s1, 256, %s28, [#allocation6], 128, 128, 8
    $region9: #{tpu_custom_call.1} parent=1 // pred_fallthru
      _
    // Predicated region
    $region10: #{tpu_custom_call.1} parent=1 // pred_check
      _
    $region11: #{tpu_custom_call.1} parent=1 // pred_check_branch
      %35 = sbr.rel (0) target = $region13
    $region12: #{tpu_custom_call.1} parent=1 // pred_region
      %36 = dma.done [#allocation3], 256
    $region13: #{tpu_custom_call.1} parent=1 // pred_fallthru
      _
    // Predicated region
    $region14: #{tpu_custom_call.1} parent=1 // pred_check
      _
    $region15: #{tpu_custom_call.1} parent=1 // pred_check_branch
      %38 = sbr.rel (0) target = $region17
    $region16: #{tpu_custom_call.1} parent=1 // pred_region
      %39 = dma.done [#allocation6], 256
    $region17: #{tpu_custom_call.1} parent=1 // pred_fallthru
      _
    %v40 = vld [vmem:[#allocation2] sm:$0xff]
    %v41 = vld [vmem:[#allocation2 + $0x8] sm:$0xff]
    %v44 = vcombine.high %v40, %v40
    %v45 = vcombine.high %v41, %v41
    %48 = vst [vmem:[#allocation7] sm:$0xf] %v40
    %49 = vst [vmem:[#allocation7 + $0x8] sm:$0xf] %v44
    %50 = vst [vmem:[#allocation7 + $0x10] sm:$0xf] %v41
    %51 = vst [vmem:[#allocation7 + $0x18] sm:$0xf] %v45
    %v52 = vld [vmem:[#allocation5] sm:$0xff]
    %v53 = vld [vmem:[#allocation5 + $0x8] sm:$0xff]
    %v56 = vcombine.low %v52, %v52
    %v57 = vcombine.low %v53, %v53
    %60 = vst [vmem:[#allocation7] sm:$0xf0] %v56
    %61 = vst [vmem:[#allocation7 + $0x8] sm:$0xf0] %v52
    %62 = vst [vmem:[#allocation7 + $0x10] sm:$0xf0] %v57
    %63 = vst [vmem:[#allocation7 + $0x18] sm:$0xf0] %v53
    // Predicated region
    $region18: #{tpu_custom_call.1} parent=1 // pred_check
      _
    $region19: #{tpu_custom_call.1} parent=1 // pred_check_branch
      %65 = sbr.rel (0) target = $region21
    $region20: #{tpu_custom_call.1} parent=1 // pred_region
      %s67 = ssub.s32 512, 512
      %68 = vsyncadd [#allocation4], %s67
      %s69 = sshll.u32 [#allocation7], 4
      %s70 = int_to_ptr.vmem [resolvable:$true] %s69
      %75 = dma.vmem_to_hbm [thread:$0]  %s70, 512, %s2, [#allocation4], 256, 256, 16
    $region21: #{tpu_custom_call.1} parent=1 // pred_fallthru
      _
    // Predicated region
    $region22: #{tpu_custom_call.1} parent=1 // pred_check
      _
    $region23: #{tpu_custom_call.1} parent=1 // pred_check_branch
      %77 = sbr.rel (0) target = $region25
    $region24: #{tpu_custom_call.1} parent=1 // pred_region
      %78 = dma.done [#allocation4], 512
    $region25: #{tpu_custom_call.1} parent=1 // pred_fallthru
      _
    %79 = vsyncpa [#allocation3], 1
    %80 = vsyncpa [#allocation6], 1
    %81 = vsyncpa [#allocation4], 1

</llo_original>
